<compile_context>
chip_gen: v7x
topology: tpu7x:2x2x1
jax: 0.10.0
libtpu: 0.0.40
codegen_flags: <defaults>
</compile_context>

<pallas_src>
import jax
import jax.numpy as jnp
from jax.experimental import pallas as pl
from jax.experimental.pallas import tpu as pltpu


def _upconv_kernel(wt_ref, b_ref, x_ref, o_ref):
    """1x1 conv on one (batch-block, spatial-tile) block.

    wt_ref : (C_in, C_out) f32 VMEM   transposed conv weights (tiny, resident)
    b_ref  : (C_out, 1)    f32 VMEM   bias
    x_ref  : (B_blk, C_in, T)  VMEM   spatial axis T lane-dense
    o_ref  : (B_blk, C_out, T) VMEM
    """
    b_blk = x_ref.shape[0]
    c_out = o_ref.shape[1]
    wt = wt_ref[...].astype(jnp.float32)          # (C_in, C_out), tiny
    bias = b_ref[...]                             # (C_out, 1) f32

    for b in range(b_blk):                        # static unroll (B_blk <= 8)
        x = x_ref[b].astype(jnp.float32)          # (C_in, T): lane-dense load
        # Full-sublane VALU multiply + sublane (XLU) reduction per out channel.
        rows = [jnp.sum(x * wt[:, o:o + 1], axis=0, keepdims=True)  # (1, T)
                for o in range(c_out)]
        y = jnp.concatenate(rows, axis=0) + bias  # (C_out, T); bias hoisted
        o_ref[b] = y.astype(o_ref.dtype)          # single lane-dense store


def _largest_divisor_leq(n: int, cap: int) -> int:
    cap = max(1, min(n, cap))
    for d in range(cap, 0, -1):
        if n % d == 0:
            return d
    return 1


def upconv_forward(x_nchw, weight, bias, *, max_lanes=65536, block_bytes=4 << 20):
    """1x1 conv forward, NCHW in / NCHW out.

    x_nchw : (N, C_in, H, W)
    weight : (C_out, C_in, 1, 1)   (PyTorch Conv2d layout)
    bias   : (C_out,)
    """
    N, C_in, H, W = x_nchw.shape
    C_out = weight.shape[0]
    HW = H * W
    itemsize = jnp.dtype(x_nchw.dtype).itemsize

    # Free reshapes: keep NCHW, put H*W in the lane axis.
    x3d = x_nchw.reshape(N, C_in, HW)
    wt = weight.reshape(C_out, C_in).T.astype(jnp.float32)    # (C_in, C_out)
    b2d = bias.reshape(C_out, 1).astype(jnp.float32)

    # --- spatial (lane) tile: as large as the per-step byte budget allows ---
    per_lane_bytes = (C_in + C_out) * itemsize
    lane_budget = max(128, int(block_bytes) // max(per_lane_bytes, 1))
    lane_budget = min(lane_budget, int(max_lanes))
    lane_budget = max(128, (lane_budget // 128) * 128)        # 128-lane multiple
    blk_hw = HW if HW <= lane_budget else lane_budget
    # Ragged last tile (only when HW > lane_budget and not divisible) is handled
    # by Pallas boundary clipping -- no jnp.pad / post-slice HBM passes needed.
    n_hw = pl.cdiv(HW, blk_hw)

    # --- batch tile: amortize per-step overhead when H*W is small -----------
    b_blk = 1
    if n_hw == 1 and N > 1:
        step_bytes = (C_in + C_out) * blk_hw * itemsize
        b_cap = max(1, int(block_bytes) // max(step_bytes, 1))
        b_cap = min(b_cap, 8)          # bound in-kernel unrolling
        b_cap = min(b_cap, N // 2)     # keep >= 2 grid steps (v7x: 2 TCs)
        b_blk = _largest_divisor_leq(N, max(1, b_cap))
    n_b = N // b_blk

    out3d = pl.pallas_call(
        _upconv_kernel,
        out_shape=jax.ShapeDtypeStruct((N, C_out, HW), x_nchw.dtype),
        grid_spec=pltpu.PrefetchScalarGridSpec(
            num_scalar_prefetch=0,
            grid=(n_b, n_hw),
            in_specs=[
                pl.BlockSpec((C_in, C_out), lambda nb, h: (0, 0)),   # weights
                pl.BlockSpec((C_out, 1), lambda nb, h: (0, 0)),      # bias
                pl.BlockSpec((b_blk, C_in, blk_hw), lambda nb, h: (nb, 0, h)),
            ],
            out_specs=pl.BlockSpec((b_blk, C_out, blk_hw),
                                   lambda nb, h: (nb, 0, h)),
        ),
        # Both grid axes are independent -> shard across TensorCores.  Raise the
        # scoped VMEM limit to 32 MiB (safe on v5e/v6e/v7x) so the large
        # double-buffered tiles always fit.
        compiler_params=pltpu.CompilerParams(
            dimension_semantics=("parallel", "parallel"),
            vmem_limit_bytes=32 * 1024 * 1024,
        ),
    )(wt, b2d, x3d)

    return out3d.reshape(N, C_out, H, W)


if __name__ == "__main__":
    # UpConv(features=4): in_channels = 8, out_channels = 4
    features = 4
    C_in = features * 2
    C_out = features
    N, H, W = 2, 16, 16

    key = jax.random.PRNGKey(0)
    kx, kw, kb = jax.random.split(key, 3)

    x = jax.random.normal(kx, (N, C_in, H, W), dtype=jnp.float32)
    # Deterministic synthetic parameters (PyTorch-like uniform init scale).
    fan_in = C_in  # kernel_size = 1
    bound = 1.0 / (fan_in ** 0.5)
    weight = jax.random.uniform(kw, (C_out, C_in, 1, 1), jnp.float32,
                                minval=-bound, maxval=bound)
    bias = jax.random.uniform(kb, (C_out,), jnp.float32,
                              minval=-bound, maxval=bound)

    out = upconv_forward(x, weight, bias)
    out = jax.block_until_ready(out)

    # Pure-JAX reference of the 1x1 conv (full-precision contraction).
    ref = jnp.einsum("oc,nchw->nohw", weight.reshape(C_out, C_in), x,
                     precision=jax.lax.Precision.HIGHEST) \
          + bias.reshape(1, C_out, 1, 1)
    assert out.shape == (N, C_out, H, W)
    assert jnp.allclose(out, ref, atol=1e-5, rtol=1e-5)

    print("KERNEL_OK")
</pallas_src>

<mosaic_0001>
module attributes {stable_mosaic.version = 11 : i64} {
  func.func @_upconv_kernel(%arg0: i32, %arg1: i32, %arg2: memref<8x4xf32, #tpu.memory_space<vmem>>, %arg3: memref<4x1xf32, #tpu.memory_space<vmem>>, %arg4: memref<1x8x256xf32, #tpu.memory_space<vmem>>, %arg5: memref<1x4x256xf32, #tpu.memory_space<vmem>>) attributes {dimension_semantics = [#tpu.dimension_semantics<parallel>, #tpu.dimension_semantics<parallel>], iteration_bounds = array<i64: 2, 1>, scalar_prefetch = 0 : i64, scratch_operands = 0 : i64, tpu.core_type = #tpu.core_type<tc>, window_params = [{pipeline_mode = #tpu.pipeline_mode<synchronous>, transform_indices = @transform_0, window_bounds = array<i64: 8, 4>}, {pipeline_mode = #tpu.pipeline_mode<synchronous>, transform_indices = @transform_1, window_bounds = array<i64: 4, 1>}, {transform_indices = @transform_2, window_bounds = array<i64: 1, 8, 256>}, {transform_indices = @transform_3, window_bounds = array<i64: 1, 4, 256>}]} {
    %c0 = arith.constant 0 : index
    %c0_0 = arith.constant 0 : index
    %0 = vector.load %arg2[%c0, %c0_0] : memref<8x4xf32, #tpu.memory_space<vmem>>, vector<8x4xf32>
    %c0_1 = arith.constant 0 : index
    %c0_2 = arith.constant 0 : index
    %1 = vector.load %arg3[%c0_1, %c0_2] : memref<4x1xf32, #tpu.memory_space<vmem>>, vector<4x1xf32>
    %c0_3 = arith.constant 0 : index
    %c0_4 = arith.constant 0 : index
    %c0_5 = arith.constant 0 : index
    %2 = vector.load %arg4[%c0_3, %c0_4, %c0_5] : memref<1x8x256xf32, #tpu.memory_space<vmem>>, vector<1x8x256xf32>
    %3 = vector.shape_cast %2 : vector<1x8x256xf32> to vector<8x256xf32>
    %4 = vector.extract_strided_slice %0 {offsets = [0, 0], sizes = [8, 1], strides = [1, 1]} : vector<8x4xf32> to vector<8x1xf32>
    %5 = vector.broadcast %4 : vector<8x1xf32> to vector<8x256xf32>
    %6 = arith.mulf %3, %5 : vector<8x256xf32>
    %cst = arith.constant dense<0.000000e+00> : vector<256xf32>
    %7 = vector.multi_reduction <add>, %6, %cst [0] : vector<8x256xf32> to vector<256xf32>
    %8 = vector.shape_cast %7 : vector<256xf32> to vector<1x256xf32>
    %9 = vector.extract_strided_slice %0 {offsets = [0, 1], sizes = [8, 1], strides = [1, 1]} : vector<8x4xf32> to vector<8x1xf32>
    %10 = vector.broadcast %9 : vector<8x1xf32> to vector<8x256xf32>
    %11 = arith.mulf %3, %10 : vector<8x256xf32>
    %cst_6 = arith.constant dense<0.000000e+00> : vector<256xf32>
    %12 = vector.multi_reduction <add>, %11, %cst_6 [0] : vector<8x256xf32> to vector<256xf32>
    %13 = vector.shape_cast %12 : vector<256xf32> to vector<1x256xf32>
    %14 = vector.extract_strided_slice %0 {offsets = [0, 2], sizes = [8, 1], strides = [1, 1]} : vector<8x4xf32> to vector<8x1xf32>
    %15 = vector.broadcast %14 : vector<8x1xf32> to vector<8x256xf32>
    %16 = arith.mulf %3, %15 : vector<8x256xf32>
    %cst_7 = arith.constant dense<0.000000e+00> : vector<256xf32>
    %17 = vector.multi_reduction <add>, %16, %cst_7 [0] : vector<8x256xf32> to vector<256xf32>
    %18 = vector.shape_cast %17 : vector<256xf32> to vector<1x256xf32>
    %19 = vector.extract_strided_slice %0 {offsets = [0, 3], sizes = [8, 1], strides = [1, 1]} : vector<8x4xf32> to vector<8x1xf32>
    %20 = vector.broadcast %19 : vector<8x1xf32> to vector<8x256xf32>
    %21 = arith.mulf %3, %20 : vector<8x256xf32>
    %cst_8 = arith.constant dense<0.000000e+00> : vector<256xf32>
    %22 = vector.multi_reduction <add>, %21, %cst_8 [0] : vector<8x256xf32> to vector<256xf32>
    %23 = vector.shape_cast %22 : vector<256xf32> to vector<1x256xf32>
    %24 = tpu.concatenate %8, %13, %18, %23 in 0 : vector<1x256xf32>, vector<1x256xf32>, vector<1x256xf32>, vector<1x256xf32> -> vector<4x256xf32>
    %25 = vector.broadcast %1 : vector<4x1xf32> to vector<4x256xf32>
    %26 = arith.addf %24, %25 : vector<4x256xf32>
    %c0_9 = arith.constant 0 : index
    %c0_10 = arith.constant 0 : index
    %c0_11 = arith.constant 0 : index
    %27 = vector.load %arg5[%c0_9, %c0_10, %c0_11] : memref<1x4x256xf32, #tpu.memory_space<vmem>>, vector<1x4x256xf32>
    %28 = vector.shape_cast %27 : vector<1x4x256xf32> to vector<4x256xf32>
    %29 = vector.shape_cast %26 : vector<4x256xf32> to vector<1x4x256xf32>
    tpu.vector_store %arg5[%c0_9, %c0_10, %c0_11], %29 {strides = array<i32>} : memref<1x4x256xf32, #tpu.memory_space<vmem>>, vector<1x4x256xf32>,
    return
  }
  func.func @transform_0(%arg0: i32, %arg1: i32) -> (i32, i32) {
    %c0_i32 = arith.constant 0 : i32
    %c0_i32_0 = arith.constant 0 : i32
    %c0_i32_1 = arith.constant 0 : i32
    return %c0_i32, %c0_i32_0 : i32, i32
  }
  func.func @transform_1(%arg0: i32, %arg1: i32) -> (i32, i32) {
    %c0_i32 = arith.constant 0 : i32
    %c0_i32_0 = arith.constant 0 : i32
    %c0_i32_1 = arith.constant 0 : i32
    return %c0_i32, %c0_i32_0 : i32, i32
  }
  func.func @transform_2(%arg0: i32, %arg1: i32) -> (i32, i32, i32) {
    %c0_i32 = arith.constant 0 : i32
    %c0_i32_0 = arith.constant 0 : i32
    return %arg0, %c0_i32, %arg1 : i32, i32, i32
  }
  func.func @transform_3(%arg0: i32, %arg1: i32) -> (i32, i32, i32) {
    %c0_i32 = arith.constant 0 : i32
    %c0_i32_0 = arith.constant 0 : i32
    return %arg0, %c0_i32, %arg1 : i32, i32, i32
  }
}

</mosaic_0001>

<llo_original>
// kernel: tpu_custom_call.1
$region0: #{tpu_custom_call.1}
  #allocation0 [shape = 'u32[]', space=smem, size = 0x4, offset = 0x4, fixed_abs, tag = 'smem constant byte address 0x4 - core index']
  #allocation1 [shape = 'u32[144,128]{1,0:T(1,128)}', space=vmem, size = 0x12000, scoped, tag = 'internal scratch']
  %s0 = inlined_call_operand.vmem [shape: f32[8,4], index: 0, kind: input, shape index: {}]
  %s1 = inlined_call_operand.vmem [shape: f32[4,1], index: 1, kind: input, shape index: {}]
  %s2 = inlined_call_operand.hbm [shape: f32[2,8,256], index: 2, kind: input, shape index: {}]
  %s3 = inlined_call_operand.hbm [shape: f32[2,4,256], index: 3, kind: output, shape index: {}]
  %s4 = sld [smem:[#allocation0]]
  $region49: #{tpu_custom_call.1} parent=0
    _
  %s6 = ssub.s32 1, %s4
  %s7 = scalar_select 0, %s6, %s4
  $region1: #{tpu_custom_call.1} parent=0
    #allocation2 [shape = 'u8[16384]{0}', space=vmem, size = 0x4000, scoped, tag = 'input window, operand 2']
    #allocation3 [shape = 's32[2]{0}', space=sflag, size = 0x8, scoped, tag = 'scoped memory for tpu_custom_call.1']
    #allocation4 [shape = 's32[2]{0}', space=sflag, size = 0x8, scoped, tag = 'scoped memory for tpu_custom_call.1']
    #allocation5 [shape = 'u8[8192]{0}', space=vmem, size = 0x2000, scoped, tag = 'output window, operand 0']
    %8 = vsyncpa [#allocation3], 0
    %s9 = scalar_lea.sflag [#allocation3], 1
    %10 = vsyncpa %s9, 0
    %11 = vsyncpa [#allocation4], 0
    %s12 = scalar_lea.sflag [#allocation4], 1
    %13 = vsyncpa %s12, 0
    loop: start=0, step=1, limit=4
    $region2: #{tpu_custom_call.1} parent=1 // loop_pre_header
      _
    $region3: #{tpu_custom_call.1} parent=1 // loop_header
      %s15 = sphi 0, %s19
      %p16 = scmp.ge.s32.totalorder %s15, 4
      %s22 = sphi 0, %s34
      %s23 = sphi 0, %s30
      %s24 = sphi 0, %s22
      %s25 = sphi 0, %s23
      %s26 = sphi 0, %s24
      %s27 = sphi 0, %s25
      %s35 = sphi 0, %s35
      %s37 = sphi 0, %s35
      %s38 = sphi 0, %s37
      %s52 = sphi 0, %s38
      %s56 = sphi 0, %s56
      %s58 = sphi 0, %s56
      %s59 = sphi 0, %s58
      %s73 = sphi 0, %s59
      %s81 = sphi 0, %s83
      %s84 = sphi 0, %s81
      %s85 = sphi 0, %s84
      %s101 = sphi 0, %s85
      %s109 = sphi 0, %s111
      %s112 = sphi 0, %s109
      %s113 = sphi 0, %s112
      %s129 = sphi 0, %s113
    $region4: #{tpu_custom_call.1} parent=1 // loop_header_branch
      %18 = sbr.rel (%p16) target = $region8
    $region5: #{tpu_custom_call.1} parent=1 // loop_body
      %s20 = ssub.s32 %s15, 1
      %s21 = ssub.s32 %s15, 2
      %s28 = sadd.s32 1, %s23
      %p29 = scmp.ge.s32.totalorder %s28, 1
      %s30 = scalar_select %p29, 0, %s28
      %s31 = sadd.s32 1, %s22
      %s32 = scalar_select %p29, %s31, %s22
      %p33 = scmp.ge.s32.totalorder %s32, 2
      %s34 = scalar_select %p33, 0, %s32
      %s36 = sadd.s32 %s35, 1
      %p39 = scmp.eq.s32.totalorder %s15, 1
      %p40 = scmp.ne.s32.totalorder %s35, %s37
      %p41 = scmp.eq.s32.totalorder %s15, 0
      %p42 = por %p40, %p41
      %p43 = scmp.ne.s32.totalorder %s35, %s37
      %p44 = scmp.eq.s32.totalorder %s20, 1
      %p45 = por %p43, %p44
      %p46 = scmp.ne.s32.totalorder %s37, %s38
      %p47 = scmp.eq.s32.totalorder %s20, 0
      %p48 = por %p46, %p47
      %p49 = scmp.ne.s32.totalorder %s37, %s38
      %p50 = scmp.eq.s32.totalorder %s21, 1
      %p51 = por %p49, %p50
      %p53 = scmp.ne.s32.totalorder %s38, %s52
      %p54 = scmp.eq.s32.totalorder %s21, 0
      %p55 = por %p53, %p54
      %s57 = sadd.s32 %s56, 1
      %p60 = scmp.eq.s32.totalorder %s15, 1
      %p61 = scmp.ne.s32.totalorder %s56, %s58
      %p62 = scmp.eq.s32.totalorder %s15, 0
      %p63 = por %p61, %p62
      %p64 = scmp.ne.s32.totalorder %s56, %s58
      %p65 = scmp.eq.s32.totalorder %s20, 1
      %p66 = por %p64, %p65
      %p67 = scmp.ne.s32.totalorder %s58, %s59
      %p68 = scmp.eq.s32.totalorder %s20, 0
      %p69 = por %p67, %p68
      %p70 = scmp.ne.s32.totalorder %s58, %s59
      %p71 = scmp.eq.s32.totalorder %s21, 1
      %p72 = por %p70, %p71
      %p74 = scmp.ne.s32.totalorder %s59, %s73
      %p75 = scmp.eq.s32.totalorder %s21, 0
      %p76 = por %p74, %p75
      %s77 = ssub.s32 %s22, %s34
      %s78 = ssub.s32 %s23, %s30
      %s79 = sor.u32 %s77, %s78
      %p80 = scmp.eq.s32.totalorder %s79, 0
      %s82 = sadd.s32 %s81, 1
      %s83 = scalar_select %p80, %s81, %s82
      %p86 = pneg %p80
      %p87 = scmp.eq.s32.totalorder %s15, 1
      %p88 = por %p86, %p87
      %p89 = scmp.ne.s32.totalorder %s81, %s84
      %p90 = scmp.eq.s32.totalorder %s15, 0
      %p91 = por %p89, %p90
      %p92 = scmp.ne.s32.totalorder %s81, %s84
      %p93 = scmp.eq.s32.totalorder %s20, 1
      %p94 = por %p92, %p93
      %p95 = scmp.ne.s32.totalorder %s84, %s85
      %p96 = scmp.eq.s32.totalorder %s20, 0
      %p97 = por %p95, %p96
      %p98 = scmp.ne.s32.totalorder %s84, %s85
      %p99 = scmp.eq.s32.totalorder %s21, 1
      %p100 = por %p98, %p99
      %p102 = scmp.ne.s32.totalorder %s85, %s101
      %p103 = scmp.eq.s32.totalorder %s21, 0
      %p104 = por %p102, %p103
      %s105 = ssub.s32 %s22, %s34
      %s106 = ssub.s32 %s23, %s30
      %s107 = sor.u32 %s105, %s106
      %p108 = scmp.eq.s32.totalorder %s107, 0
      %s110 = sadd.s32 %s109, 1
      %s111 = scalar_select %p108, %s109, %s110
      %p114 = pneg %p108
      %p115 = scmp.eq.s32.totalorder %s15, 1
      %p116 = por %p114, %p115
      %p117 = scmp.ne.s32.totalorder %s109, %s112
      %p118 = scmp.eq.s32.totalorder %s15, 0
      %p119 = por %p117, %p118
      %p120 = scmp.ne.s32.totalorder %s109, %s112
      %p121 = scmp.eq.s32.totalorder %s20, 1
      %p122 = por %p120, %p121
      %p123 = scmp.ne.s32.totalorder %s112, %s113
      %p124 = scmp.eq.s32.totalorder %s20, 0
      %p125 = por %p123, %p124
      %p126 = scmp.ne.s32.totalorder %s112, %s113
      %p127 = scmp.eq.s32.totalorder %s21, 1
      %p128 = por %p126, %p127
      %p130 = scmp.ne.s32.totalorder %s113, %s129
      %p131 = scmp.eq.s32.totalorder %s21, 0
      %p132 = por %p130, %p131
      %p133 = scmp.le.s32.totalorder 1, %s15
      %p134 = scmp.lt.s32.totalorder %s15, 3
      %p135 = pnand %p133, %p134
      %p136 = pneg %p135
      // Predicated region
      $region9: #{tpu_custom_call.1} parent=5 // pred_check
        _
      $region10: #{tpu_custom_call.1} parent=5 // pred_check_branch
        %138 = sbr.rel (%p135) target = $region12
      $region11: #{tpu_custom_call.1} parent=5 // pred_region
        %s139 = ssub.s32 %s15, 1
        // Predicated region
        $region13: #{tpu_custom_call.1} parent=11 // pred_check
          %p140 = pneg %p48
        $region14: #{tpu_custom_call.1} parent=11 // pred_check_branch
          %142 = sbr.rel (%p140) target = $region16
        $region15: #{tpu_custom_call.1} parent=11 // pred_region
          _
        $region16: #{tpu_custom_call.1} parent=11 // pred_fallthru
          _
        // Predicated region
        $region17: #{tpu_custom_call.1} parent=11 // pred_check
          %p143 = pneg %p69
        $region18: #{tpu_custom_call.1} parent=11 // pred_check_branch
          %145 = sbr.rel (%p143) target = $region20
        $region19: #{tpu_custom_call.1} parent=11 // pred_region
          _
        $region20: #{tpu_custom_call.1} parent=11 // pred_fallthru
          _
      $region12: #{tpu_custom_call.1} parent=5 // pred_fallthru
        _
      %p146 = scmp.lt.s32.totalorder %s15, 2
      // Predicated region
      $region21: #{tpu_custom_call.1} parent=5 // pred_check
        %p147 = pneg %p146
      $region22: #{tpu_custom_call.1} parent=5 // pred_check_branch
        %149 = sbr.rel (%p147) target = $region24
      $region23: #{tpu_custom_call.1} parent=5 // pred_region
        // Predicated region
        $region25: #{tpu_custom_call.1} parent=23 // pred_check
          %p150 = pneg %p91
        $region26: #{tpu_custom_call.1} parent=23 // pred_check_branch
          %152 = sbr.rel (%p150) target = $region28
        $region27: #{tpu_custom_call.1} parent=23 // pred_region
          %s153 = sand.u32 %s81, 1
          %s154 = scalar_lea.sflag [#allocation3], %s153
          %s155 = sand.u32 %s81, 1
          %s156 = smul.addr %s155, 16
          %s157 = scalar_lea.vmem [#allocation2], %s156
          %s158 = smul.u32 2, %s23
          %s160 = ssub.s32 256, 256
          %161 = vsyncadd %s154, %s160
          %s162 = smul.addr %s22, 2
          %s163 = sadd.s32 %s158, %s162
          %s164 = smul.addr %s163, 128
          %s165 = scalar_lea.hbm %s2, %s164
          %s167 = sshll.u32 %s157, 4
          %s168 = int_to_ptr.vmem [resolvable:$true] %s167
          %170 = dma.hbm_to_vmem [thread:$0]  %s165, 256, %s168, %s154
        $region28: #{tpu_custom_call.1} parent=23 // pred_fallthru
          _
      $region24: #{tpu_custom_call.1} parent=5 // pred_fallthru
        _
      %p171 = scmp.le.s32.totalorder 1, %s15
      %p172 = scmp.lt.s32.totalorder %s15, 3
      %p173 = pnand %p171, %p172
      %p174 = pneg %p173
      // Predicated region
      $region29: #{tpu_custom_call.1} parent=5 // pred_check
        _
      $region30: #{tpu_custom_call.1} parent=5 // pred_check_branch
        %176 = sbr.rel (%p173) target = $region32
      $region31: #{tpu_custom_call.1} parent=5 // pred_region
        %s177 = ssub.s32 %s15, 1
        %s178 = sand.u32 %s84, 1
        %s179 = scalar_lea.sflag [#allocation3], %s178
        %s180 = sand.u32 %s84, 1
        %s181 = smul.addr %s180, 16
        %s182 = scalar_lea.vmem [#allocation2], %s181
        // Predicated region
        $region33: #{tpu_custom_call.1} parent=31 // pred_check
          %p183 = pneg %p97
        $region34: #{tpu_custom_call.1} parent=31 // pred_check_branch
          %185 = sbr.rel (%p183) target = $region36
        $region35: #{tpu_custom_call.1} parent=31 // pred_region
          %186 = dma.done %s179, 256
        $region36: #{tpu_custom_call.1} parent=31 // pred_fallthru
          _
        %p187 = pneg %p48
        %p188 = pneg %p45
        %p189 = pneg %p69
        %p190 = pneg %p66
        %s191 = sand.u32 %s84, 1
        %s192 = scalar_lea.sflag [#allocation3], %s191
        %s193 = sand.u32 %s84, 1
        %s194 = smul.addr %s193, 16
        %s195 = scalar_lea.vmem [#allocation2], %s194
        %p196 = pneg %p97
        %p197 = pneg %p94
        %p198 = pneg %p125
        %p199 = pneg %p122
        %s200 = sand.u32 %s112, 1
        %s201 = scalar_lea.sflag [#allocation4], %s200
        %s202 = sand.u32 %s112, 1
        %s203 = smul.addr %s202, 8
        %s204 = scalar_lea.vmem [#allocation5], %s203
        %s205 = smul.u32 2, %s25
        %s206 = smul.u32 2, %s25
        %v207 = vld [vmem:[%s0] sm:$0xff]
        %v208 = vld [vmem:[%s1] sm:$0xf]
        %v209 = vld [vmem:[%s182] sm:$0xff]
        %v210 = vld [vmem:[%s182 + $0x8] sm:$0xff]
        %212 = vset.pattern.permute.xlu0 0
        %213 = vperm.xlu0 %212, %v207
        %v214 = vpop.permute.xlu0 %213
        %v216 = vmul.f32 %v209, %v214
        %v217 = vmul.f32 %v210, %v214
        %v218 = vrot.slane %v216, 4
        %v219 = vadd.f32 %v216, %v218
        %v220 = vrot.slane %v219, 2
        %v221 = vadd.f32 %v219, %v220
        %v222 = vrot.slane %v221, 1
        %v223 = vadd.f32 %v221, %v222
        %v224 = vrot.slane %v217, 4
        %v225 = vadd.f32 %v217, %v224
        %v226 = vrot.slane %v225, 2
        %v227 = vadd.f32 %v225, %v226
        %v228 = vrot.slane %v227, 1
        %v229 = vadd.f32 %v227, %v228
        %230 = vset.pattern.permute.xlu0 1
        %231 = vperm.xlu0 %230, %v207
        %v232 = vpop.permute.xlu0 %231
        %v234 = vmul.f32 %v209, %v232
        %v235 = vmul.f32 %v210, %v232
        %v236 = vrot.slane %v234, 4
        %v237 = vadd.f32 %v234, %v236
        %v238 = vrot.slane %v237, 2
        %v239 = vadd.f32 %v237, %v238
        %v240 = vrot.slane %v239, 1
        %v241 = vadd.f32 %v239, %v240
        %v242 = vrot.slane %v235, 4
        %v243 = vadd.f32 %v235, %v242
        %v244 = vrot.slane %v243, 2
        %v245 = vadd.f32 %v243, %v244
        %v246 = vrot.slane %v245, 1
        %v247 = vadd.f32 %v245, %v246
        %248 = vset.pattern.permute.xlu0 2
        %249 = vperm.xlu0 %248, %v207
        %v250 = vpop.permute.xlu0 %249
        %v252 = vmul.f32 %v209, %v250
        %v253 = vmul.f32 %v210, %v250
        %v254 = vrot.slane %v252, 4
        %v255 = vadd.f32 %v252, %v254
        %v256 = vrot.slane %v255, 2
        %v257 = vadd.f32 %v255, %v256
        %v258 = vrot.slane %v257, 1
        %v259 = vadd.f32 %v257, %v258
        %v260 = vrot.slane %v253, 4
        %v261 = vadd.f32 %v253, %v260
        %v262 = vrot.slane %v261, 2
        %v263 = vadd.f32 %v261, %v262
        %v264 = vrot.slane %v263, 1
        %v265 = vadd.f32 %v263, %v264
        %266 = vset.pattern.permute.xlu0 3
        %267 = vperm.xlu0 %266, %v207
        %v268 = vpop.permute.xlu0 %267
        %v270 = vmul.f32 %v209, %v268
        %v271 = vmul.f32 %v210, %v268
        %v272 = vrot.slane %v270, 4
        %v273 = vadd.f32 %v270, %v272
        %v274 = vrot.slane %v273, 2
        %v275 = vadd.f32 %v273, %v274
        %v276 = vrot.slane %v275, 1
        %v277 = vadd.f32 %v275, %v276
        %v278 = vrot.slane %v271, 4
        %v279 = vadd.f32 %v271, %v278
        %v280 = vrot.slane %v279, 2
        %v281 = vadd.f32 %v279, %v280
        %v282 = vrot.slane %v281, 1
        %v283 = vadd.f32 %v281, %v282
        %vm284 = vcmask 1040384
        %v285 = vsel %vm284, %v223, %v241
        %v286 = vsel %vm284, %v229, %v247
        %vm287 = vcmask 1041408
        %v288 = vsel %vm287, %v285, %v259
        %v289 = vsel %vm287, %v286, %v265
        %vm290 = vcmask 1042432
        %v291 = vsel %vm290, %v288, %v277
        %v292 = vsel %vm290, %v289, %v283
        %294 = vset.pattern.permute.xlu0 0
        %295 = vperm.xlu0 %294, %v208
        %v296 = vpop.permute.xlu0 %295
        %v298 = vadd.f32 %v291, %v296
        %v299 = vadd.f32 %v292, %v296
        %v302 = vcombine.low %v298, %v299
        %304 = vst [vmem:[%s204] sm:$0xff] %v302
        %s305 = sand.u32 %s112, 1
        %s306 = scalar_lea.sflag [#allocation4], %s305
        %s307 = sand.u32 %s112, 1
        %s308 = smul.addr %s307, 8
        %s309 = scalar_lea.vmem [#allocation5], %s308
        // Predicated region
        $region37: #{tpu_custom_call.1} parent=31 // pred_check
          %p310 = pneg %p122
        $region38: #{tpu_custom_call.1} parent=31 // pred_check_branch
          %312 = sbr.rel (%p310) target = $region40
        $region39: #{tpu_custom_call.1} parent=31 // pred_region
          %s313 = smul.u32 2, %s25
          %s315 = ssub.s32 128, 128
          %316 = vsyncadd %s306, %s315
          %s317 = smul.addr %s24, 2
          %s318 = sadd.s32 %s313, %s317
          %s319 = smul.addr %s318, 64
          %s320 = scalar_lea.hbm %s3, %s319
          %s322 = sshll.u32 %s309, 4
          %s323 = int_to_ptr.vmem [resolvable:$true] %s322
          %325 = dma.vmem_to_hbm [thread:$0]  %s323, 128, %s320, %s306
        $region40: #{tpu_custom_call.1} parent=31 // pred_fallthru
          _
      $region32: #{tpu_custom_call.1} parent=5 // pred_fallthru
        _
      %p326 = scmp.le.s32.totalorder 2, %s15
      // Predicated region
      $region41: #{tpu_custom_call.1} parent=5 // pred_check
        %p327 = pneg %p326
      $region42: #{tpu_custom_call.1} parent=5 // pred_check_branch
        %329 = sbr.rel (%p327) target = $region44
      $region43: #{tpu_custom_call.1} parent=5 // pred_region
        %s330 = ssub.s32 %s15, 2
        // Predicated region
        $region45: #{tpu_custom_call.1} parent=43 // pred_check
          %p331 = pneg %p128
        $region46: #{tpu_custom_call.1} parent=43 // pred_check_branch
          %333 = sbr.rel (%p331) target = $region48
        $region47: #{tpu_custom_call.1} parent=43 // pred_region
          %s334 = sand.u32 %s113, 1
          %s335 = scalar_lea.sflag [#allocation4], %s334
          %s336 = sand.u32 %s113, 1
          %s337 = smul.addr %s336, 8
          %s338 = scalar_lea.vmem [#allocation5], %s337
          %339 = dma.done %s335, 128
        $region48: #{tpu_custom_call.1} parent=43 // pred_fallthru
          _
      $region44: #{tpu_custom_call.1} parent=5 // pred_fallthru
        _
    $region6: #{tpu_custom_call.1} parent=1 // loop_footer
      %s19 = sadd.s32 1, %s15
    $region7: #{tpu_custom_call.1} parent=1 // loop_footer_branch
      %14 = sbr.rel target = $region3
    $region8: #{tpu_custom_call.1} parent=1 // loop_exit
      _
    %340 = vsyncpa [#allocation3], 1
    %s341 = scalar_lea.sflag [#allocation3], 1
    %342 = vsyncpa %s341, 1
    %343 = vsyncpa [#allocation4], 1
    %s344 = scalar_lea.sflag [#allocation4], 1
    %345 = vsyncpa %s344, 1

</llo_original>
